<compile_context>
chip_gen: v5e
topology: v5e:2x2
jax: 0.10.0
libtpu: 0.0.40
codegen_flags: <defaults>
</compile_context>

<pallas_src>
import functools

import jax
import jax.numpy as jnp
from jax import lax
from jax.experimental import pallas as pl
from jax.experimental.pallas import tpu as pltpu

_LANE = 128
_SUBLANE = 8
_LN_EPS = 1e-5


def _round_up(x, m):
    return ((x + m - 1) // m) * m


def _pad2(a, rows, cols):
    a = jnp.asarray(a, jnp.float32)
    return jnp.pad(a, ((0, rows - a.shape[0]), (0, cols - a.shape[1])))


@functools.lru_cache(maxsize=1)
def _vmem_capacity_bytes():
    try:
        return int(pltpu.get_tpu_info().vmem_capacity_bytes)
    except Exception:
        return 64 << 20  # conservative fallback (v7x per-TensorCore VMEM)


def _make_fused_mlp_kernel(num_hidden, hidden_true, mm_dtype):
    """(Linear -> ReLU -> LayerNorm) x num_hidden -> Linear on one row tile.
    All intermediates stay in VMEM/vregs; weights are resident across the grid."""
    inv_h = 1.0 / float(max(hidden_true, 1))

    def kernel(*refs):
        x_ref = refs[0]
        o_ref = refs[-1]
        p = refs[1:-1]

        h = x_ref[...].astype(jnp.float32)          # (TM, d_in)
        idx = 0
        for _ in range(num_hidden):
            w_ref, vec_ref = p[idx], p[idx + 1]
            idx += 2
            vec = vec_ref[...]                      # (8, d_h_p): rows = b, gamma, beta
            b, g, beta = vec[0:1, :], vec[1:2, :], vec[2:3, :]
            # MXU matmul: bf16 (or f32) operands, f32 accumulation.
            z = jnp.dot(h.astype(mm_dtype), w_ref[...],
                        preferred_element_type=jnp.float32) + b
            z = jnp.maximum(z, 0.0)                 # ReLU in f32
            # Single-pass LayerNorm statistics over the TRUE hidden width.
            # Padded lanes of z are exactly zero, so summing the full padded
            # width and dividing by hidden_true gives the unpadded mean/E[x^2].
            s = jnp.sum(z, axis=-1, keepdims=True)
            ss = jnp.sum(z * z, axis=-1, keepdims=True)
            mean = s * inv_h
            var = jnp.maximum(ss * inv_h - mean * mean, 0.0)
            h = (z - mean) * lax.rsqrt(var + _LN_EPS) * g + beta
            # TODO(synk): dropout omitted — module evaluated with training=False.
        w_ref, b_ref = p[idx], p[idx + 1]
        o_ref[...] = (jnp.dot(h.astype(mm_dtype), w_ref[...],
                              preferred_element_type=jnp.float32)
                      + b_ref[...]).astype(o_ref.dtype)

    return kernel


def mlp_apply_pallas(params, x, *, mm_dtype=jnp.bfloat16, row_tile=None,
                     out_dtype=jnp.float32):
    """params: [(w, b, gamma, beta)] * (L-1) + [(w, b)], weights stored as
    (in_features, out_features).  x: (N, input_dim)."""
    num_layers = len(params)
    num_hidden = num_layers - 1
    n, d_in = x.shape
    d_hidden = params[0][0].shape[1] if num_hidden else 0
    d_out = params[-1][0].shape[1]
    d_h_p = _round_up(max(d_hidden, 1), _LANE)      # hidden stays lane-dense in VMEM

    mm_bytes = jnp.dtype(mm_dtype).itemsize

    # ---- resident parameter footprint (SINGLE-buffered via pl.Buffered(1)). ----
    param_bytes = 0
    prev = d_in
    for _ in range(num_hidden):
        param_bytes += prev * d_h_p * mm_bytes + _SUBLANE * d_h_p * 4
        prev = d_h_p
    param_bytes += prev * d_out * mm_bytes + _SUBLANE * d_out * 4

    # ---- per-row VMEM bytes: x/out pipeline buffers + in-kernel temporaries. ----
    widest = max(d_h_p, d_in, d_out)
    per_row_bytes = (2 * d_in * x.dtype.itemsize                    # x, double-buffered
                     + 2 * d_out * jnp.dtype(out_dtype).itemsize    # out, double-buffered
                     + 6 * widest * 4)                              # z, z*z, LN temps, casts

    # ---- generation-aware budgets. ----
    vmem_cap = _vmem_capacity_bytes()
    if vmem_cap >= (100 << 20):            # v5e / v6e: 128 MiB VMEM
        budget, hw_limit, tile_cap = 64 << 20, 100 << 20, 2048
    else:                                  # v7x: 64 MiB per TensorCore
        budget, hw_limit, tile_cap = 32 << 20, 56 << 20, 1024

    tm_budget = max((budget - param_bytes) // per_row_bytes, _SUBLANE)
    tm_budget = max((int(tm_budget) // _SUBLANE) * _SUBLANE, _SUBLANE)
    # Keep the row grid >= 2 steps when N allows it, so the "parallel" axis can
    # shard across both TensorCores on v7x (megacore).
    tm_split = max(_SUBLANE, _round_up(-(-n // 2), _SUBLANE))
    tm = int(min(tile_cap, tm_budget, tm_split))
    if row_tile is not None:
        tm = max(_SUBLANE, (int(row_tile) // _SUBLANE) * _SUBLANE)

    grid = (pl.cdiv(n, tm),)               # ragged last block; OOB writes masked

    # VMEM limit derived from the actual footprint + headroom, capped per part.
    footprint = param_bytes + per_row_bytes * tm
    vmem_limit = int(min(hw_limit, max(footprint + (16 << 20), 32 << 20)))

    # ---- inputs / specs.  No wrapper-side row/feature padding of x or out. ----
    resident = functools.partial(pl.BlockSpec, index_map=lambda i: (0, 0),
                                 pipeline_mode=pl.Buffered(1))

    inputs = [x]
    in_specs = [pl.BlockSpec((tm, d_in), lambda i: (i, 0))]

    prev = d_in
    for (w, b, g, beta) in params[:-1]:
        # Pack b / gamma / beta into one sublane-aligned (8, d_h_p) tile.
        vec = jnp.concatenate(
            [_pad2(b, 1, d_h_p), _pad2(g, 1, d_h_p), _pad2(beta, 1, d_h_p),
             jnp.zeros((_SUBLANE - 3, d_h_p), jnp.float32)], axis=0)
        inputs += [_pad2(w, prev, d_h_p).astype(mm_dtype), vec]
        in_specs += [resident((prev, d_h_p)), resident((_SUBLANE, d_h_p))]
        prev = d_h_p
    w, b = params[-1]
    inputs += [_pad2(w, prev, d_out).astype(mm_dtype),
               jnp.asarray(b, jnp.float32).reshape(1, d_out)]
    in_specs += [resident((prev, d_out)), resident((1, d_out))]

    kernel = _make_fused_mlp_kernel(num_hidden, d_hidden, mm_dtype)

    return pl.pallas_call(
        kernel,
        out_shape=jax.ShapeDtypeStruct((n, d_out), out_dtype),
        grid=grid,
        in_specs=in_specs,
        out_specs=pl.BlockSpec((tm, d_out), lambda i: (i, 0)),
        compiler_params=pltpu.CompilerParams(
            dimension_semantics=("parallel",),
            vmem_limit_bytes=vmem_limit,
        ),
    )(*inputs)


@functools.partial(jax.jit, static_argnames=("mm_dtype", "row_tile", "out_dtype"))
def mlp_forward(params, x, mm_dtype=jnp.bfloat16, row_tile=None,
                out_dtype=jnp.float32):
    # InputNorm=False -> Identity on the input; whole forward is one pallas_call.
    return mlp_apply_pallas(params, x, mm_dtype=mm_dtype, row_tile=row_tile,
                            out_dtype=out_dtype)


def init_mlp_params(key, input_dim, hidden_dim, output_dim, num_layers):
    """Deterministic init mirroring nn.Linear default (uniform +-1/sqrt(fan_in))
    and nn.LayerNorm default (gamma=1, beta=0)."""
    dims = [input_dim] + [hidden_dim] * (num_layers - 1) + [output_dim]
    params = []
    for i in range(num_layers):
        fan_in, fan_out = dims[i], dims[i + 1]
        key, kw, kb = jax.random.split(key, 3)
        bound = 1.0 / (fan_in ** 0.5)
        w = jax.random.uniform(kw, (fan_in, fan_out), jnp.float32, -bound, bound)
        b = jax.random.uniform(kb, (1, fan_out), jnp.float32, -bound, bound)
        if i < num_layers - 1:
            gamma = jnp.ones((1, fan_out), jnp.float32)
            beta = jnp.zeros((1, fan_out), jnp.float32)
            params.append((w, b, gamma, beta))
        else:
            params.append((w, b))
    return params


if __name__ == "__main__":
    # Small shapes consistent with the module: N nodes, feature dims.
    N, INPUT_DIM, HIDDEN_DIM, OUTPUT_DIM, NUM_LAYERS = 8, 16, 32, 8, 3

    key = jax.random.PRNGKey(0)
    key, kx = jax.random.split(key)
    x = jax.random.normal(kx, (N, INPUT_DIM), jnp.float32)
    params = init_mlp_params(key, INPUT_DIM, HIDDEN_DIM, OUTPUT_DIM, NUM_LAYERS)

    # Pure-JAX reference (same semantics as the torch module in eval mode).
    def ref_apply(params, x):
        h = x
        for w, b, gamma, beta in params[:-1]:
            h = jnp.maximum(h @ w + b, 0.0)
            mean = jnp.mean(h, axis=-1, keepdims=True)
            var = jnp.mean(jnp.square(h - mean), axis=-1, keepdims=True)
            h = (h - mean) * lax.rsqrt(var + _LN_EPS) * gamma + beta
        w, b = params[-1]
        return h @ w + b

    ref = ref_apply(params, x)

    # Exact-semantics path (f32 MXU operands): strict check against torch math.
    out_f32 = jax.block_until_ready(mlp_forward(params, x, mm_dtype=jnp.float32))
    assert out_f32.shape == (N, OUTPUT_DIM)
    assert jnp.allclose(out_f32, ref, atol=1e-4, rtol=1e-4)

    # Performance path (bf16 MXU operands, f32 accumulation + f32 LayerNorm).
    out_bf16 = jax.block_until_ready(mlp_forward(params, x, mm_dtype=jnp.bfloat16))
    assert out_bf16.shape == (N, OUTPUT_DIM)
    assert jnp.allclose(out_bf16, ref, atol=5e-2, rtol=5e-2)

    print("KERNEL_OK")
</pallas_src>

<mosaic_0001>
module attributes {stable_mosaic.version = 11 : i64} {
  func.func @kernel(%arg0: i32, %arg1: memref<8x16xf32, #tpu.memory_space<vmem>>, %arg2: memref<16x128xf32, #tpu.memory_space<vmem>>, %arg3: memref<8x128xf32, #tpu.memory_space<vmem>>, %arg4: memref<128x128xf32, #tpu.memory_space<vmem>>, %arg5: memref<8x128xf32, #tpu.memory_space<vmem>>, %arg6: memref<128x8xf32, #tpu.memory_space<vmem>>, %arg7: memref<1x8xf32, #tpu.memory_space<vmem>>, %arg8: memref<8x8xf32, #tpu.memory_space<vmem>>) attributes {dimension_semantics = [#tpu.dimension_semantics<parallel>], iteration_bounds = array<i64: 1>, scalar_prefetch = 0 : i64, scratch_operands = 0 : i64, tpu.core_type = #tpu.core_type<tc>, window_params = [{transform_indices = @transform_0, window_bounds = array<i64: 8, 16>}, {pipeline_mode = #tpu.pipeline_mode<synchronous>, transform_indices = @transform_1, window_bounds = array<i64: 16, 128>}, {pipeline_mode = #tpu.pipeline_mode<synchronous>, transform_indices = @transform_2, window_bounds = array<i64: 8, 128>}, {pipeline_mode = #tpu.pipeline_mode<synchronous>, transform_indices = @transform_3, window_bounds = array<i64: 128, 128>}, {pipeline_mode = #tpu.pipeline_mode<synchronous>, transform_indices = @transform_4, window_bounds = array<i64: 8, 128>}, {pipeline_mode = #tpu.pipeline_mode<synchronous>, transform_indices = @transform_5, window_bounds = array<i64: 128, 8>}, {pipeline_mode = #tpu.pipeline_mode<synchronous>, transform_indices = @transform_6, window_bounds = array<i64: 1, 8>}, {transform_indices = @transform_7, window_bounds = array<i64: 8, 8>}]} {
    %c0 = arith.constant 0 : index
    %c0_0 = arith.constant 0 : index
    %0 = vector.load %arg1[%c0, %c0_0] : memref<8x16xf32, #tpu.memory_space<vmem>>, vector<8x16xf32>
    %c0_1 = arith.constant 0 : index
    %c0_2 = arith.constant 0 : index
    %1 = vector.load %arg3[%c0_1, %c0_2] : memref<8x128xf32, #tpu.memory_space<vmem>>, vector<8x128xf32>
    %2 = vector.extract_strided_slice %1 {offsets = [0, 0], sizes = [1, 128], strides = [1, 1]} : vector<8x128xf32> to vector<1x128xf32>
    %3 = vector.extract_strided_slice %1 {offsets = [1, 0], sizes = [1, 128], strides = [1, 1]} : vector<8x128xf32> to vector<1x128xf32>
    %4 = vector.extract_strided_slice %1 {offsets = [2, 0], sizes = [1, 128], strides = [1, 1]} : vector<8x128xf32> to vector<1x128xf32>
    %c0_3 = arith.constant 0 : index
    %c0_4 = arith.constant 0 : index
    %5 = vector.load %arg2[%c0_3, %c0_4] : memref<16x128xf32, #tpu.memory_space<vmem>>, vector<16x128xf32>
    %cst = arith.constant dense<0.000000e+00> : vector<8x128xf32>
    %6 = tpu.matmul %0, %5, %cst {dimension_numbers = #tpu.dot_dimension_numbers<[1], [0], [0], [1], [0, 0, 1, 1], [], []>} : vector<8x16xf32>, vector<16x128xf32>, vector<8x128xf32> -> vector<8x128xf32>
    %7 = vector.broadcast %2 : vector<1x128xf32> to vector<8x128xf32>
    %8 = arith.addf %6, %7 : vector<8x128xf32>
    %cst_5 = arith.constant 0.000000e+00 : f32
    %9 = vector.broadcast %cst_5 : f32 to vector<8x128xf32>
    %10 = arith.maximumf %8, %9 : vector<8x128xf32>
    %cst_6 = arith.constant dense<0.000000e+00> : vector<8xf32>
    %11 = vector.multi_reduction <add>, %10, %cst_6 [1] : vector<8x128xf32> to vector<8xf32>
    %12 = vector.shape_cast %11 : vector<8xf32> to vector<8x1xf32>
    %13 = arith.mulf %10, %10 : vector<8x128xf32>
    %cst_7 = arith.constant dense<0.000000e+00> : vector<8xf32>
    %14 = vector.multi_reduction <add>, %13, %cst_7 [1] : vector<8x128xf32> to vector<8xf32>
    %15 = vector.shape_cast %14 : vector<8xf32> to vector<8x1xf32>
    %cst_8 = arith.constant 3.125000e-02 : f32
    %16 = vector.broadcast %cst_8 : f32 to vector<8x1xf32>
    %17 = arith.mulf %12, %16 : vector<8x1xf32>
    %cst_9 = arith.constant 3.125000e-02 : f32
    %18 = vector.broadcast %cst_9 : f32 to vector<8x1xf32>
    %19 = arith.mulf %15, %18 : vector<8x1xf32>
    %20 = arith.mulf %17, %17 : vector<8x1xf32>
    %21 = arith.subf %19, %20 : vector<8x1xf32>
    %cst_10 = arith.constant 0.000000e+00 : f32
    %22 = vector.broadcast %cst_10 : f32 to vector<8x1xf32>
    %23 = arith.maximumf %21, %22 : vector<8x1xf32>
    %24 = vector.broadcast %17 : vector<8x1xf32> to vector<8x128xf32>
    %25 = arith.subf %10, %24 : vector<8x128xf32>
    %cst_11 = arith.constant 9.99999974E-6 : f32
    %26 = vector.broadcast %cst_11 : f32 to vector<8x1xf32>
    %27 = arith.addf %23, %26 : vector<8x1xf32>
    %28 = math.rsqrt %27 : vector<8x1xf32>
    %29 = vector.broadcast %28 : vector<8x1xf32> to vector<8x128xf32>
    %30 = arith.mulf %25, %29 : vector<8x128xf32>
    %31 = vector.broadcast %3 : vector<1x128xf32> to vector<8x128xf32>
    %32 = arith.mulf %30, %31 : vector<8x128xf32>
    %33 = vector.broadcast %4 : vector<1x128xf32> to vector<8x128xf32>
    %34 = arith.addf %32, %33 : vector<8x128xf32>
    %c0_12 = arith.constant 0 : index
    %c0_13 = arith.constant 0 : index
    %35 = vector.load %arg5[%c0_12, %c0_13] : memref<8x128xf32, #tpu.memory_space<vmem>>, vector<8x128xf32>
    %36 = vector.extract_strided_slice %35 {offsets = [0, 0], sizes = [1, 128], strides = [1, 1]} : vector<8x128xf32> to vector<1x128xf32>
    %37 = vector.extract_strided_slice %35 {offsets = [1, 0], sizes = [1, 128], strides = [1, 1]} : vector<8x128xf32> to vector<1x128xf32>
    %38 = vector.extract_strided_slice %35 {offsets = [2, 0], sizes = [1, 128], strides = [1, 1]} : vector<8x128xf32> to vector<1x128xf32>
    %c0_14 = arith.constant 0 : index
    %c0_15 = arith.constant 0 : index
    %39 = vector.load %arg4[%c0_14, %c0_15] : memref<128x128xf32, #tpu.memory_space<vmem>>, vector<128x128xf32>
    %cst_16 = arith.constant dense<0.000000e+00> : vector<8x128xf32>
    %40 = tpu.matmul %34, %39, %cst_16 {dimension_numbers = #tpu.dot_dimension_numbers<[1], [0], [0], [1], [0, 0, 1, 1], [], []>} : vector<8x128xf32>, vector<128x128xf32>, vector<8x128xf32> -> vector<8x128xf32>
    %41 = vector.broadcast %36 : vector<1x128xf32> to vector<8x128xf32>
    %42 = arith.addf %40, %41 : vector<8x128xf32>
    %cst_17 = arith.constant 0.000000e+00 : f32
    %43 = vector.broadcast %cst_17 : f32 to vector<8x128xf32>
    %44 = arith.maximumf %42, %43 : vector<8x128xf32>
    %cst_18 = arith.constant dense<0.000000e+00> : vector<8xf32>
    %45 = vector.multi_reduction <add>, %44, %cst_18 [1] : vector<8x128xf32> to vector<8xf32>
    %46 = vector.shape_cast %45 : vector<8xf32> to vector<8x1xf32>
    %47 = arith.mulf %44, %44 : vector<8x128xf32>
    %cst_19 = arith.constant dense<0.000000e+00> : vector<8xf32>
    %48 = vector.multi_reduction <add>, %47, %cst_19 [1] : vector<8x128xf32> to vector<8xf32>
    %49 = vector.shape_cast %48 : vector<8xf32> to vector<8x1xf32>
    %cst_20 = arith.constant 3.125000e-02 : f32
    %50 = vector.broadcast %cst_20 : f32 to vector<8x1xf32>
    %51 = arith.mulf %46, %50 : vector<8x1xf32>
    %cst_21 = arith.constant 3.125000e-02 : f32
    %52 = vector.broadcast %cst_21 : f32 to vector<8x1xf32>
    %53 = arith.mulf %49, %52 : vector<8x1xf32>
    %54 = arith.mulf %51, %51 : vector<8x1xf32>
    %55 = arith.subf %53, %54 : vector<8x1xf32>
    %cst_22 = arith.constant 0.000000e+00 : f32
    %56 = vector.broadcast %cst_22 : f32 to vector<8x1xf32>
    %57 = arith.maximumf %55, %56 : vector<8x1xf32>
    %58 = vector.broadcast %51 : vector<8x1xf32> to vector<8x128xf32>
    %59 = arith.subf %44, %58 : vector<8x128xf32>
    %cst_23 = arith.constant 9.99999974E-6 : f32
    %60 = vector.broadcast %cst_23 : f32 to vector<8x1xf32>
    %61 = arith.addf %57, %60 : vector<8x1xf32>
    %62 = math.rsqrt %61 : vector<8x1xf32>
    %63 = vector.broadcast %62 : vector<8x1xf32> to vector<8x128xf32>
    %64 = arith.mulf %59, %63 : vector<8x128xf32>
    %65 = vector.broadcast %37 : vector<1x128xf32> to vector<8x128xf32>
    %66 = arith.mulf %64, %65 : vector<8x128xf32>
    %67 = vector.broadcast %38 : vector<1x128xf32> to vector<8x128xf32>
    %68 = arith.addf %66, %67 : vector<8x128xf32>
    %c0_24 = arith.constant 0 : index
    %c0_25 = arith.constant 0 : index
    %69 = vector.load %arg6[%c0_24, %c0_25] : memref<128x8xf32, #tpu.memory_space<vmem>>, vector<128x8xf32>
    %cst_26 = arith.constant dense<0.000000e+00> : vector<8x8xf32>
    %70 = tpu.matmul %68, %69, %cst_26 {dimension_numbers = #tpu.dot_dimension_numbers<[1], [0], [0], [1], [0, 0, 1, 1], [], []>} : vector<8x128xf32>, vector<128x8xf32>, vector<8x8xf32> -> vector<8x8xf32>
    %c0_27 = arith.constant 0 : index
    %c0_28 = arith.constant 0 : index
    %71 = vector.load %arg7[%c0_27, %c0_28] : memref<1x8xf32, #tpu.memory_space<vmem>>, vector<1x8xf32>
    %72 = vector.broadcast %71 : vector<1x8xf32> to vector<8x8xf32>
    %73 = arith.addf %70, %72 : vector<8x8xf32>
    %c0_29 = arith.constant 0 : index
    %c0_30 = arith.constant 0 : index
    %74 = vector.load %arg8[%c0_29, %c0_30] : memref<8x8xf32, #tpu.memory_space<vmem>>, vector<8x8xf32>
    tpu.vector_store %arg8[%c0_29, %c0_30], %73 {strides = array<i32>} : memref<8x8xf32, #tpu.memory_space<vmem>>, vector<8x8xf32>,
    return
  }
  func.func @transform_0(%arg0: i32) -> (i32, i32) {
    %c0_i32 = arith.constant 0 : i32
    %c0_i32_0 = arith.constant 0 : i32
    return %arg0, %c0_i32 : i32, i32
  }
  func.func @transform_1(%arg0: i32) -> (i32, i32) {
    %c0_i32 = arith.constant 0 : i32
    %c0_i32_0 = arith.constant 0 : i32
    %c0_i32_1 = arith.constant 0 : i32
    return %c0_i32, %c0_i32_0 : i32, i32
  }
  func.func @transform_2(%arg0: i32) -> (i32, i32) {
    %c0_i32 = arith.constant 0 : i32
    %c0_i32_0 = arith.constant 0 : i32
    %c0_i32_1 = arith.constant 0 : i32
    return %c0_i32, %c0_i32_0 : i32, i32
  }
  func.func @transform_3(%arg0: i32) -> (i32, i32) {
    %c0_i32 = arith.constant 0 : i32
    %c0_i32_0 = arith.constant 0 : i32
    %c0_i32_1 = arith.constant 0 : i32
    return %c0_i32, %c0_i32_0 : i32, i32
  }
  func.func @transform_4(%arg0: i32) -> (i32, i32) {
    %c0_i32 = arith.constant 0 : i32
    %c0_i32_0 = arith.constant 0 : i32
    %c0_i32_1 = arith.constant 0 : i32
    return %c0_i32, %c0_i32_0 : i32, i32
  }
  func.func @transform_5(%arg0: i32) -> (i32, i32) {
    %c0_i32 = arith.constant 0 : i32
    %c0_i32_0 = arith.constant 0 : i32
    %c0_i32_1 = arith.constant 0 : i32
    return %c0_i32, %c0_i32_0 : i32, i32
  }
  func.func @transform_6(%arg0: i32) -> (i32, i32) {
    %c0_i32 = arith.constant 0 : i32
    %c0_i32_0 = arith.constant 0 : i32
    %c0_i32_1 = arith.constant 0 : i32
    return %c0_i32, %c0_i32_0 : i32, i32
  }
  func.func @transform_7(%arg0: i32) -> (i32, i32) {
    %c0_i32 = arith.constant 0 : i32
    %c0_i32_0 = arith.constant 0 : i32
    return %arg0, %c0_i32 : i32, i32
  }
}

</mosaic_0001>

<llo_original>
// kernel: mlp_forward.1
$region0: #{mlp_forward.1}
  #allocation0 [shape = 'u32[]', space=smem, size = 0x4, offset = 0x4, fixed_abs, tag = 'smem constant byte address 0x4 - core index']
  #allocation1 [shape = 'u32[72,128]{1,0:T(1,128)}', space=vmem, size = 0x9000, scoped, tag = 'internal scratch']
  %s0 = inlined_call_operand.vmem [shape: f32[8,16], index: 0, kind: input, shape index: {}]
  %s1 = inlined_call_operand.vmem [shape: f32[16,128], index: 1, kind: input, shape index: {}]
  %s2 = inlined_call_operand.vmem [shape: f32[8,128], index: 2, kind: input, shape index: {}]
  %s3 = inlined_call_operand.vmem [shape: f32[128,128], index: 3, kind: input, shape index: {}]
  %s4 = inlined_call_operand.vmem [shape: f32[8,128], index: 4, kind: input, shape index: {}]
  %s5 = inlined_call_operand.vmem [shape: f32[128,8], index: 5, kind: input, shape index: {}]
  %s6 = inlined_call_operand.vmem [shape: f32[1,8], index: 6, kind: input, shape index: {}]
  %s7 = inlined_call_operand.hbm [shape: f32[8,8], index: 7, kind: output, shape index: {}]
  %s8 = sld [smem:[#allocation0]]
  $region38: #{mlp_forward.1} parent=0
    _
  %s10 = ssub.s32 1, %s8
  %s11 = scalar_select 0, %s10, %s8
  $region1: #{mlp_forward.1} parent=0
    #allocation2 [shape = 'u8[4096]{0}', space=vmem, size = 0x1000, scoped, tag = 'output window, operand 0, single buffered']
    #allocation3 [shape = 's32[1]{0}', space=sflag, size = 0x4, scoped, tag = 'scoped memory for mlp_forward.1']
    %12 = vsyncpa [#allocation3], 0
    // Predicated region
    $region2: #{mlp_forward.1} parent=1 // pred_check
      _
    $region3: #{mlp_forward.1} parent=1 // pred_check_branch
      %14 = sbr.rel (0) target = $region5
    $region4: #{mlp_forward.1} parent=1 // pred_region
      _
    $region5: #{mlp_forward.1} parent=1 // pred_fallthru
      _
    // Predicated region
    $region6: #{mlp_forward.1} parent=1 // pred_check
      _
    $region7: #{mlp_forward.1} parent=1 // pred_check_branch
      %16 = sbr.rel (0) target = $region9
    $region8: #{mlp_forward.1} parent=1 // pred_region
      _
    $region9: #{mlp_forward.1} parent=1 // pred_fallthru
      _
    // Predicated region
    $region10: #{mlp_forward.1} parent=1 // pred_check
      _
    $region11: #{mlp_forward.1} parent=1 // pred_check_branch
      %18 = sbr.rel (0) target = $region13
    $region12: #{mlp_forward.1} parent=1 // pred_region
      _
    $region13: #{mlp_forward.1} parent=1 // pred_fallthru
      _
    // Predicated region
    $region14: #{mlp_forward.1} parent=1 // pred_check
      _
    $region15: #{mlp_forward.1} parent=1 // pred_check_branch
      %20 = sbr.rel (0) target = $region17
    $region16: #{mlp_forward.1} parent=1 // pred_region
      _
    $region17: #{mlp_forward.1} parent=1 // pred_fallthru
      _
    // Predicated region
    $region18: #{mlp_forward.1} parent=1 // pred_check
      _
    $region19: #{mlp_forward.1} parent=1 // pred_check_branch
      %22 = sbr.rel (0) target = $region21
    $region20: #{mlp_forward.1} parent=1 // pred_region
      _
    $region21: #{mlp_forward.1} parent=1 // pred_fallthru
      _
    // Predicated region
    $region22: #{mlp_forward.1} parent=1 // pred_check
      _
    $region23: #{mlp_forward.1} parent=1 // pred_check_branch
      %24 = sbr.rel (0) target = $region25
    $region24: #{mlp_forward.1} parent=1 // pred_region
      _
    $region25: #{mlp_forward.1} parent=1 // pred_fallthru
      _
    // Predicated region
    $region26: #{mlp_forward.1} parent=1 // pred_check
      _
    $region27: #{mlp_forward.1} parent=1 // pred_check_branch
      %26 = sbr.rel (0) target = $region29
    $region28: #{mlp_forward.1} parent=1 // pred_region
      _
    $region29: #{mlp_forward.1} parent=1 // pred_fallthru
      _
    %v27 = vld [vmem:[%s0] sm:$0xff]
    %v28 = vld [vmem:[%s2] sm:$0xff]
    %v29 = vld [vmem:[%s1] sm:$0xff]
    %v30 = vld [vmem:[%s1 + $0x8] sm:$0xff]
    %v31 = vperm.slane %v28, 0
    %vm32 = vcmask 130048
    %v34 = vsel %vm32, %v27, 0
    %36 = vmatpush.msra.mxu0 0.0
    %37 = vmatpush.msra.mxu0 0.0
    %38 = vmatpush.msra.mxu0 0.0
    %39 = vmatpush.msra.mxu0 0.0
    %40 = vmatpush.msra.mxu0 0.0
    %41 = vmatpush.msra.mxu0 0.0
    %42 = vmatpush.msra.mxu0 0.0
    %43 = vmatpush.msra.mxu0 0.0
    %44 = vmatpush.msra.mxu0 0.0
    %45 = vmatpush.msra.mxu0 0.0
    %46 = vmatpush.msra.mxu0 0.0
    %47 = vmatpush.msra.mxu0 0.0
    %48 = vmatpush.msra.mxu0 0.0
    %49 = vmatpush.msra.mxu0 0.0
    %50 = vmatpush.msra.mxu0 %v30
    %51 = vmatpush.msra.mxu0 %v29
    %52 = vmatmul.f32.gmra.mxu0 %v34
    %v53 = vpop.f32.mrf.mxu0
    %v54 = vadd.f32 %v31, %v53
    %55 = vdwg.mxu0
    %v56 = vmax.f32 %v54, 0.0
    %57 = vadd.xlane.f32.xlu0 %v56
    %v58 = vpop.xlane.xlu0 %57
    %v59 = vmul.f32 %v56, %v56
    %60 = vadd.xlane.f32.xlu0 %v59
    %v61 = vpop.xlane.xlu0 %60
    %v62 = vmul.f32 %v58, 0.03125
    %v63 = vmul.f32 %v61, 0.03125
    %v64 = vmul.f32 %v62, %v62
    %v65 = vsub.f32 %v63, %v64
    %v66 = vmax.f32 %v65, 0.0
    %v67 = vsub.f32 %v56, %v62
    %v68 = vadd.f32 %v66, 1e-05
    %v69 = vrsqrt.pop %v68
    %v70 = vmul.f32 %v69, %v68
    %v71 = vmul.f32 %v70, %v69
    %v72 = vmul.f32 0.5, %v71
    %v73 = vsub.f32 1.5, %v72
    %v74 = vmul.f32 %v69, %v73
    %vm75 = vweird.f32 %v68
    %vm76 = vweird.f32 %v69
    %vm77 = vmor %vm75, %vm76
    %v78 = vsel %vm77, %v69, %v74
    %v79 = vmul.f32 %v67, %v78
    %v80 = vperm.slane %v28, 1
    %v81 = vmul.f32 %v79, %v80
    %v82 = vperm.slane %v28, 2
    %v83 = vadd.f32 %v81, %v82
    %v84 = vld [vmem:[%s4] sm:$0xff]
    %v85 = vld [vmem:[%s3] sm:$0xff]
    %v86 = vld [vmem:[%s3 + $0x8] sm:$0xff]
    %v87 = vld [vmem:[%s3 + $0x10] sm:$0xff]
    %v88 = vld [vmem:[%s3 + $0x18] sm:$0xff]
    %v89 = vld [vmem:[%s3 + $0x20] sm:$0xff]
    %v90 = vld [vmem:[%s3 + $0x28] sm:$0xff]
    %v91 = vld [vmem:[%s3 + $0x30] sm:$0xff]
    %v92 = vld [vmem:[%s3 + $0x38] sm:$0xff]
    %v93 = vld [vmem:[%s3 + $0x40] sm:$0xff]
    %v94 = vld [vmem:[%s3 + $0x48] sm:$0xff]
    %v95 = vld [vmem:[%s3 + $0x50] sm:$0xff]
    %v96 = vld [vmem:[%s3 + $0x58] sm:$0xff]
    %v97 = vld [vmem:[%s3 + $0x60] sm:$0xff]
    %v98 = vld [vmem:[%s3 + $0x68] sm:$0xff]
    %v99 = vld [vmem:[%s3 + $0x70] sm:$0xff]
    %v100 = vld [vmem:[%s3 + $0x78] sm:$0xff]
    %v101 = vperm.slane %v84, 0
    %102 = vmatpush.msra.mxu0 %v100
    %103 = vmatpush.msra.mxu0 %v99
    %104 = vmatpush.msra.mxu0 %v98
    %105 = vmatpush.msra.mxu0 %v97
    %106 = vmatpush.msra.mxu0 %v96
    %107 = vmatpush.msra.mxu0 %v95
    %108 = vmatpush.msra.mxu0 %v94
    %109 = vmatpush.msra.mxu0 %v93
    %110 = vmatpush.msra.mxu0 %v92
    %111 = vmatpush.msra.mxu0 %v91
    %112 = vmatpush.msra.mxu0 %v90
    %113 = vmatpush.msra.mxu0 %v89
    %114 = vmatpush.msra.mxu0 %v88
    %115 = vmatpush.msra.mxu0 %v87
    %116 = vmatpush.msra.mxu0 %v86
    %117 = vmatpush.msra.mxu0 %v85
    %118 = vmatmul.f32.gmra.mxu0 %v83
    %v119 = vpop.f32.mrf.mxu0
    %v120 = vadd.f32 %v101, %v119
    %121 = vdwg.mxu0
    %v122 = vmax.f32 %v120, 0.0
    %123 = vadd.xlane.f32.xlu0 %v122
    %v124 = vpop.xlane.xlu0 %123
    %v125 = vmul.f32 %v122, %v122
    %126 = vadd.xlane.f32.xlu0 %v125
    %v127 = vpop.xlane.xlu0 %126
    %v128 = vmul.f32 %v124, 0.03125
    %v129 = vmul.f32 %v127, 0.03125
    %v130 = vmul.f32 %v128, %v128
    %v131 = vsub.f32 %v129, %v130
    %v132 = vmax.f32 %v131, 0.0
    %v133 = vsub.f32 %v122, %v128
    %v134 = vadd.f32 %v132, 1e-05
    %v135 = vrsqrt.pop %v134
    %v136 = vmul.f32 %v135, %v134
    %v137 = vmul.f32 %v136, %v135
    %v138 = vmul.f32 0.5, %v137
    %v139 = vsub.f32 1.5, %v138
    %v140 = vmul.f32 %v135, %v139
    %vm141 = vweird.f32 %v134
    %vm142 = vweird.f32 %v135
    %vm143 = vmor %vm141, %vm142
    %v144 = vsel %vm143, %v135, %v140
    %v145 = vmul.f32 %v133, %v144
    %v146 = vperm.slane %v84, 1
    %v147 = vmul.f32 %v145, %v146
    %v148 = vperm.slane %v84, 2
    %v149 = vadd.f32 %v147, %v148
    %v150 = vld [vmem:[%s5] sm:$0xff]
    %v151 = vld [vmem:[%s5 + $0x8] sm:$0xff]
    %v152 = vld [vmem:[%s5 + $0x10] sm:$0xff]
    %v153 = vld [vmem:[%s5 + $0x18] sm:$0xff]
    %v154 = vld [vmem:[%s5 + $0x20] sm:$0xff]
    %v155 = vld [vmem:[%s5 + $0x28] sm:$0xff]
    %v156 = vld [vmem:[%s5 + $0x30] sm:$0xff]
    %v157 = vld [vmem:[%s5 + $0x38] sm:$0xff]
    %v158 = vld [vmem:[%s5 + $0x40] sm:$0xff]
    %v159 = vld [vmem:[%s5 + $0x48] sm:$0xff]
    %v160 = vld [vmem:[%s5 + $0x50] sm:$0xff]
    %v161 = vld [vmem:[%s5 + $0x58] sm:$0xff]
    %v162 = vld [vmem:[%s5 + $0x60] sm:$0xff]
    %v163 = vld [vmem:[%s5 + $0x68] sm:$0xff]
    %v164 = vld [vmem:[%s5 + $0x70] sm:$0xff]
    %v165 = vld [vmem:[%s5 + $0x78] sm:$0xff]
    %v166 = vld [vmem:[%s6] sm:$0x1]
    %v168 = vperm.slane %v166, 0
    %170 = vmatpush.msra.mxu0 %v165
    %171 = vmatpush.msra.mxu0 %v164
    %172 = vmatpush.msra.mxu0 %v163
    %173 = vmatpush.msra.mxu0 %v162
    %174 = vmatpush.msra.mxu0 %v161
    %175 = vmatpush.msra.mxu0 %v160
    %176 = vmatpush.msra.mxu0 %v159
    %177 = vmatpush.msra.mxu0 %v158
    %178 = vmatpush.msra.mxu0 %v157
    %179 = vmatpush.msra.mxu0 %v156
    %180 = vmatpush.msra.mxu0 %v155
    %181 = vmatpush.msra.mxu0 %v154
    %182 = vmatpush.msra.mxu0 %v153
    %183 = vmatpush.msra.mxu0 %v152
    %184 = vmatpush.msra.mxu0 %v151
    %185 = vmatpush.msra.mxu0 %v150
    %186 = vmatmul.f32.gmra.mxu0 %v149
    %v187 = vpop.f32.mrf.mxu0
    %v188 = vadd.f32 %v168, %v187
    %189 = vdwg.mxu0
    %vm190 = vcmask 64512
    %191 = vst.msk [vmem:[#allocation2] sm:$0xff] %vm190, %v188
    // Predicated region
    $region30: #{mlp_forward.1} parent=1 // pred_check
      _
    $region31: #{mlp_forward.1} parent=1 // pred_check_branch
      %193 = sbr.rel (0) target = $region33
    $region32: #{mlp_forward.1} parent=1 // pred_region
      %195 = vsyncadd [#allocation3], 0
      %s197 = sshll.u32 [#allocation2], 4
      %s198 = int_to_ptr.vmem [resolvable:$true] %s197
      %s199 = sshll.u32 %s7, 4
      %s200 = int_to_ptr.hbm [resolvable:$true] %s199
      %202 = dma.vmem_to_hbm [thread:$0]  %s198, 128, %s200, [#allocation3]
    $region33: #{mlp_forward.1} parent=1 // pred_fallthru
      _
    // Predicated region
    $region34: #{mlp_forward.1} parent=1 // pred_check
      _
    $region35: #{mlp_forward.1} parent=1 // pred_check_branch
      %204 = sbr.rel (0) target = $region37
    $region36: #{mlp_forward.1} parent=1 // pred_region
      %206 = dma.done [#allocation3], 128
    $region37: #{mlp_forward.1} parent=1 // pred_fallthru
      _
    %207 = vsyncpa [#allocation3], 1

</llo_original>
